<compile_context>
chip_gen: v5e
topology: v5e:2x2
jax: 0.10.0
libtpu: 0.0.40
codegen_flags: <defaults>
</compile_context>

<pallas_src>
import functools

import jax
import jax.numpy as jnp
from jax import lax
from jax.experimental import pallas as pl
from jax.experimental.pallas import tpu as pltpu

_LANE = 128
_SUBLANE = 8

_VMEM_LIMIT_CACHE = None
_SINGLE_BUFFER_PARAMS = None  # resolved on first pallas_call: True / False


def _round_up(x, m):
    return ((x + m - 1) // m) * m


def _cdiv(a, b):
    return -(-a // b)


def _vmem_limit_bytes():
    """~75% of per-core VMEM, capped at 100 MiB (v5e/v6e), ~48 MiB on v7x."""
    global _VMEM_LIMIT_CACHE
    if _VMEM_LIMIT_CACHE is None:
        try:
            cap = pltpu.get_tpu_info().vmem_capacity_bytes
        except Exception:
            cap = 128 * 1024 * 1024
        _VMEM_LIMIT_CACHE = min(int(cap * 3 // 4), 100 * 1024 * 1024)
    return _VMEM_LIMIT_CACHE


def _pick_batch_tile(B, batch_tile):
    """Largest sublane-aligned tile <= batch_tile that still gives >=2 grid
    steps whenever the batch allows it (v7x megacore / DMA-compute overlap)."""
    half = _round_up(max(1, (B + 1) // 2), _SUBLANE)
    tb = min(_round_up(max(batch_tile, 1), _SUBLANE), half)
    tb = max(tb, _SUBLANE)
    return tb, _cdiv(B, tb)


def _fcn_kernel(n_hidden_layers,
                x_ref, w0_ref, b0_ref, wh_ref, bh_ref, we_ref, be_ref,
                o_ref):
    mxu_dtype = we_ref.dtype  # bf16 (default) or f32; activations stay f32.

    # First layer: Linear(N_INPUT, N_HIDDEN) + tanh.  K = n_in (unpadded).
    h = jnp.tanh(
        jnp.dot(x_ref[...], w0_ref[...], preferred_element_type=jnp.float32)
        + b0_ref[...]
    )

    # Hidden layers: (N_LAYERS - 1) x (Linear(N_HIDDEN, N_HIDDEN) + tanh).
    if n_hidden_layers > 0:
        if n_hidden_layers <= 8:
            for l in range(n_hidden_layers):
                h = jnp.tanh(
                    jnp.dot(h.astype(mxu_dtype), wh_ref[l],
                            preferred_element_type=jnp.float32)
                    + bh_ref[l]
                )
        else:
            # Long chains: dynamic layer index bounds vreg live ranges.
            def body(l, h):
                return jnp.tanh(
                    jnp.dot(h.astype(mxu_dtype), wh_ref[l],
                            preferred_element_type=jnp.float32)
                    + bh_ref[l]
                )
            h = lax.fori_loop(0, n_hidden_layers, body, h)

    # Output layer: Linear(N_HIDDEN, N_OUTPUT), no activation.
    o_ref[...] = (
        jnp.dot(h.astype(mxu_dtype), we_ref[...],
                preferred_element_type=jnp.float32)
        + be_ref[...]
    ).astype(o_ref.dtype)


def fcn_forward(inputs, params, *, batch_tile=1024, compute_dtype=jnp.bfloat16):
    """inputs: list of [B, d_i] arrays (concatenated on last dim, like torch.cat)."""
    global _SINGLE_BUFFER_PARAMS

    # torch.cat glue (tiny: n_in columns).  No padding of x at all.
    x = jnp.concatenate(inputs, axis=-1)
    B, n_in = x.shape
    x_c = x.astype(compute_dtype)

    w0, b0, wh, bh, we, be = params
    n_hidden = w0.shape[1]
    n_layers_hidden = wh.shape[0]
    n_out = we.shape[1]

    # Lane-dense padded feature widths (hidden / output only; K stays n_in).
    n_h_p = _round_up(n_hidden, _LANE)
    n_out_p = _round_up(n_out, _LANE)

    tb, grid = _pick_batch_tile(B, batch_tile)

    # Zero-padded weights keep padded lanes exactly zero (tanh(0+0)==0).
    w0_p = jnp.pad(w0, ((0, 0), (0, n_h_p - n_hidden))).astype(compute_dtype)
    b0_p = jnp.pad(b0, ((0, 0), (0, n_h_p - n_hidden))).astype(jnp.float32)
    we_p = jnp.pad(we, ((0, n_h_p - n_hidden),
                        (0, n_out_p - n_out))).astype(compute_dtype)
    be_p = jnp.pad(be, ((0, 0), (0, n_out_p - n_out))).astype(jnp.float32)

    if n_layers_hidden == 0:
        # Guard: never hand a zero-length BlockSpec dim to lowering (never read).
        wh_p = jnp.zeros((1, n_h_p, n_h_p), compute_dtype)
        bh_p = jnp.zeros((1, 1, n_h_p), jnp.float32)
        wh_blk = 1
    else:
        wh_p = jnp.pad(wh, ((0, 0), (0, n_h_p - n_hidden),
                            (0, n_h_p - n_hidden))).astype(compute_dtype)
        bh_p = jnp.pad(bh, ((0, 0), (0, 0),
                            (0, n_h_p - n_hidden))).astype(jnp.float32)
        wh_blk = n_layers_hidden

    kernel = functools.partial(_fcn_kernel, n_layers_hidden)

    # Advisory cost estimate for the XLA scheduler.
    b_eff = grid * tb
    itemsize = jnp.dtype(compute_dtype).itemsize
    flops = 2 * b_eff * (n_in * n_h_p
                         + n_layers_hidden * n_h_p * n_h_p
                         + n_h_p * n_out_p)
    transcendentals = b_eff * n_h_p * (1 + n_layers_hidden)
    bytes_accessed = (x_c.size * itemsize
                      + (w0_p.size + wh_p.size + we_p.size) * itemsize
                      + (b0_p.size + bh_p.size + be_p.size) * 4
                      + b_eff * n_out_p * 4)
    cost = pl.CostEstimate(flops=flops, transcendentals=transcendentals,
                           bytes_accessed=bytes_accessed)

    def call(single_buffer_params):
        param_mode = pl.Buffered(1) if single_buffer_params else None

        def pspec(shape):
            idx = lambda i, _n=len(shape): (0,) * _n
            if param_mode is None:
                return pl.BlockSpec(shape, idx)
            return pl.BlockSpec(shape, idx, pipeline_mode=param_mode)

        in_specs = [
            # activations: tiled over batch, feature dim = full (unpadded) n_in
            pl.BlockSpec((tb, n_in), lambda i: (i, 0)),
            pspec((n_in, n_h_p)),
            pspec((1, n_h_p)),
            pspec((wh_blk, n_h_p, n_h_p)),
            pspec((wh_blk, 1, n_h_p)),
            pspec((n_h_p, n_out_p)),
            pspec((1, n_out_p)),
        ]

        return pl.pallas_call(
            kernel,
            out_shape=jax.ShapeDtypeStruct((B, n_out_p), jnp.float32),
            grid_spec=pltpu.PrefetchScalarGridSpec(
                num_scalar_prefetch=0,
                grid=(grid,),
                in_specs=in_specs,
                out_specs=pl.BlockSpec((tb, n_out_p), lambda i: (i, 0)),
            ),
            compiler_params=pltpu.CompilerParams(
                dimension_semantics=("parallel",),
                vmem_limit_bytes=_vmem_limit_bytes(),
            ),
            cost_estimate=cost,
        )(x_c, w0_p, b0_p, wh_p, bh_p, we_p, be_p)

    if _SINGLE_BUFFER_PARAMS is None:
        try:
            out_p = jax.block_until_ready(call(True))
            _SINGLE_BUFFER_PARAMS = True
        except Exception:
            # Installed Pallas rejects buffer_count=1 -> default double-buffering.
            _SINGLE_BUFFER_PARAMS = False
            out_p = call(False)
    else:
        out_p = call(_SINGLE_BUFFER_PARAMS)

    # Only the padded output lanes need slicing off (batch rows are exact).
    return out_p[:, :n_out]


def init_fcn_params(key, n_input, n_output, n_hidden, n_layers):
    """PyTorch nn.Linear default init: U(-1/sqrt(fan_in), 1/sqrt(fan_in)).
    Weights stored as [in, out]."""
    ks = jax.random.split(key, 6)

    def uni(k, shape, fan_in):
        bound = 1.0 / jnp.sqrt(jnp.float32(fan_in))
        return jax.random.uniform(k, shape, jnp.float32, -bound, bound)

    w0 = uni(ks[0], (n_input, n_hidden), n_input)
    b0 = uni(ks[1], (1, n_hidden), n_input)
    wh = uni(ks[2], (n_layers - 1, n_hidden, n_hidden), n_hidden)
    bh = uni(ks[3], (n_layers - 1, 1, n_hidden), n_hidden)
    we = uni(ks[4], (n_hidden, n_output), n_hidden)
    be = uni(ks[5], (1, n_output), n_hidden)
    return (w0, b0, wh, bh, we, be)


def fcn_reference(inputs, params):
    """Pure-JAX f32 reference (mirrors the PyTorch forward)."""
    x = jnp.concatenate(inputs, axis=-1)
    w0, b0, wh, bh, we, be = params
    h = jnp.tanh(x @ w0 + b0)
    for l in range(wh.shape[0]):
        h = jnp.tanh(h @ wh[l] + bh[l])
    return h @ we + be


if __name__ == "__main__":
    key = jax.random.PRNGKey(0)

    # --- Case 1: small PINN config FCN(2, 1, 32, 3), batch=8, exact f32 path --
    N_INPUT, N_OUTPUT, N_HIDDEN, N_LAYERS = 2, 1, 32, 3
    BATCH = 8
    kp, kx, kt, k2 = jax.random.split(key, 4)
    params = init_fcn_params(kp, N_INPUT, N_OUTPUT, N_HIDDEN, N_LAYERS)
    inputs = [jax.random.normal(kx, (BATCH, 1), jnp.float32),
              jax.random.normal(kt, (BATCH, 1), jnp.float32)]

    out = jax.block_until_ready(
        fcn_forward(inputs, params, compute_dtype=jnp.float32))
    ref = fcn_reference(inputs, params)
    assert out.shape == (BATCH, N_OUTPUT), out.shape
    assert jnp.allclose(out, ref, atol=1e-5, rtol=1e-5), "mismatch (case 1, f32)"

    # --- Case 2: N_LAYERS == 1 guard + partial boundary block, exact f32 ------
    k2p, k2x, k2t = jax.random.split(k2, 3)
    params2 = init_fcn_params(k2p, 2, 3, 32, 1)          # no hidden blocks
    B2 = 300                                             # not a tile multiple
    inputs2 = [jax.random.normal(k2x, (B2, 1), jnp.float32),
               jax.random.normal(k2t, (B2, 1), jnp.float32)]
    out2 = jax.block_until_ready(
        fcn_forward(inputs2, params2, batch_tile=64, compute_dtype=jnp.float32))
    ref2 = fcn_reference(inputs2, params2)
    assert out2.shape == (B2, 3), out2.shape
    assert jnp.allclose(out2, ref2, atol=1e-5, rtol=1e-5), "mismatch (case 2, f32)"

    # --- Case 3: default bf16 MXU path, >=2-step grid + partial last block ----
    inputs3 = [jax.random.normal(k2x, (B2, 1), jnp.float32),
               jax.random.normal(k2t, (B2, 1), jnp.float32)]
    out3 = jax.block_until_ready(fcn_forward(inputs3, params))  # bf16 default
    ref3 = fcn_reference(inputs3, params)
    assert out3.shape == (B2, N_OUTPUT), out3.shape
    assert jnp.allclose(out3, ref3, atol=5e-2, rtol=5e-2), "mismatch (case 3, bf16)"

    print("KERNEL_OK")
</pallas_src>

<mosaic_0001>
module attributes {stable_mosaic.version = 11 : i64} {
  func.func @_fcn_kernel(%arg0: i32, %arg1: memref<8x2xf32, #tpu.memory_space<vmem>>, %arg2: memref<2x128xf32, #tpu.memory_space<vmem>>, %arg3: memref<1x128xf32, #tpu.memory_space<vmem>>, %arg4: memref<2x128x128xf32, #tpu.memory_space<vmem>>, %arg5: memref<2x1x128xf32, #tpu.memory_space<vmem>>, %arg6: memref<128x128xf32, #tpu.memory_space<vmem>>, %arg7: memref<1x128xf32, #tpu.memory_space<vmem>>, %arg8: memref<8x128xf32, #tpu.memory_space<vmem>>) attributes {dimension_semantics = [#tpu.dimension_semantics<parallel>], iteration_bounds = array<i64: 1>, scalar_prefetch = 0 : i64, scratch_operands = 0 : i64, tpu.core_type = #tpu.core_type<tc>, window_params = [{transform_indices = @transform_0, window_bounds = array<i64: 8, 2>}, {pipeline_mode = #tpu.pipeline_mode<synchronous>, transform_indices = @transform_1, window_bounds = array<i64: 2, 128>}, {pipeline_mode = #tpu.pipeline_mode<synchronous>, transform_indices = @transform_2, window_bounds = array<i64: 1, 128>}, {pipeline_mode = #tpu.pipeline_mode<synchronous>, transform_indices = @transform_3, window_bounds = array<i64: 2, 128, 128>}, {pipeline_mode = #tpu.pipeline_mode<synchronous>, transform_indices = @transform_4, window_bounds = array<i64: 2, 1, 128>}, {pipeline_mode = #tpu.pipeline_mode<synchronous>, transform_indices = @transform_5, window_bounds = array<i64: 128, 128>}, {pipeline_mode = #tpu.pipeline_mode<synchronous>, transform_indices = @transform_6, window_bounds = array<i64: 1, 128>}, {transform_indices = @transform_7, window_bounds = array<i64: 8, 128>}]} {
    %c0 = arith.constant 0 : index
    %c0_0 = arith.constant 0 : index
    %0 = vector.load %arg1[%c0, %c0_0] : memref<8x2xf32, #tpu.memory_space<vmem>>, vector<8x2xf32>
    %c0_1 = arith.constant 0 : index
    %c0_2 = arith.constant 0 : index
    %1 = vector.load %arg2[%c0_1, %c0_2] : memref<2x128xf32, #tpu.memory_space<vmem>>, vector<2x128xf32>
    %cst = arith.constant dense<0.000000e+00> : vector<8x128xf32>
    %2 = tpu.matmul %0, %1, %cst {dimension_numbers = #tpu.dot_dimension_numbers<[1], [0], [0], [1], [0, 0, 1, 1], [], []>} : vector<8x2xf32>, vector<2x128xf32>, vector<8x128xf32> -> vector<8x128xf32>
    %c0_3 = arith.constant 0 : index
    %c0_4 = arith.constant 0 : index
    %3 = vector.load %arg3[%c0_3, %c0_4] : memref<1x128xf32, #tpu.memory_space<vmem>>, vector<1x128xf32>
    %4 = vector.broadcast %3 : vector<1x128xf32> to vector<8x128xf32>
    %5 = arith.addf %2, %4 : vector<8x128xf32>
    %6 = math.tanh %5 : vector<8x128xf32>
    %c0_5 = arith.constant 0 : index
    %c0_6 = arith.constant 0 : index
    %c0_7 = arith.constant 0 : index
    %7 = vector.load %arg4[%c0_5, %c0_6, %c0_7] : memref<2x128x128xf32, #tpu.memory_space<vmem>>, vector<1x128x128xf32>
    %8 = vector.shape_cast %7 : vector<1x128x128xf32> to vector<128x128xf32>
    %cst_8 = arith.constant dense<0.000000e+00> : vector<8x128xf32>
    %9 = tpu.matmul %6, %8, %cst_8 {dimension_numbers = #tpu.dot_dimension_numbers<[1], [0], [0], [1], [0, 0, 1, 1], [], []>} : vector<8x128xf32>, vector<128x128xf32>, vector<8x128xf32> -> vector<8x128xf32>
    %c0_9 = arith.constant 0 : index
    %c0_10 = arith.constant 0 : index
    %c0_11 = arith.constant 0 : index
    %10 = vector.load %arg5[%c0_9, %c0_10, %c0_11] : memref<2x1x128xf32, #tpu.memory_space<vmem>>, vector<1x1x128xf32>
    %11 = vector.shape_cast %10 : vector<1x1x128xf32> to vector<1x128xf32>
    %12 = vector.broadcast %11 : vector<1x128xf32> to vector<8x128xf32>
    %13 = arith.addf %9, %12 : vector<8x128xf32>
    %14 = math.tanh %13 : vector<8x128xf32>
    %c1 = arith.constant 1 : index
    %c0_12 = arith.constant 0 : index
    %c0_13 = arith.constant 0 : index
    %15 = vector.load %arg4[%c1, %c0_12, %c0_13] : memref<2x128x128xf32, #tpu.memory_space<vmem>>, vector<1x128x128xf32>
    %16 = vector.shape_cast %15 : vector<1x128x128xf32> to vector<128x128xf32>
    %cst_14 = arith.constant dense<0.000000e+00> : vector<8x128xf32>
    %17 = tpu.matmul %14, %16, %cst_14 {dimension_numbers = #tpu.dot_dimension_numbers<[1], [0], [0], [1], [0, 0, 1, 1], [], []>} : vector<8x128xf32>, vector<128x128xf32>, vector<8x128xf32> -> vector<8x128xf32>
    %c1_15 = arith.constant 1 : index
    %c0_16 = arith.constant 0 : index
    %c0_17 = arith.constant 0 : index
    %18 = vector.load %arg5[%c1_15, %c0_16, %c0_17] : memref<2x1x128xf32, #tpu.memory_space<vmem>>, vector<1x1x128xf32>
    %19 = vector.shape_cast %18 : vector<1x1x128xf32> to vector<1x128xf32>
    %20 = vector.broadcast %19 : vector<1x128xf32> to vector<8x128xf32>
    %21 = arith.addf %17, %20 : vector<8x128xf32>
    %22 = math.tanh %21 : vector<8x128xf32>
    %c0_18 = arith.constant 0 : index
    %c0_19 = arith.constant 0 : index
    %23 = vector.load %arg6[%c0_18, %c0_19] : memref<128x128xf32, #tpu.memory_space<vmem>>, vector<128x128xf32>
    %cst_20 = arith.constant dense<0.000000e+00> : vector<8x128xf32>
    %24 = tpu.matmul %22, %23, %cst_20 {dimension_numbers = #tpu.dot_dimension_numbers<[1], [0], [0], [1], [0, 0, 1, 1], [], []>} : vector<8x128xf32>, vector<128x128xf32>, vector<8x128xf32> -> vector<8x128xf32>
    %c0_21 = arith.constant 0 : index
    %c0_22 = arith.constant 0 : index
    %25 = vector.load %arg7[%c0_21, %c0_22] : memref<1x128xf32, #tpu.memory_space<vmem>>, vector<1x128xf32>
    %26 = vector.broadcast %25 : vector<1x128xf32> to vector<8x128xf32>
    %27 = arith.addf %24, %26 : vector<8x128xf32>
    %c0_23 = arith.constant 0 : index
    %c0_24 = arith.constant 0 : index
    %28 = vector.load %arg8[%c0_23, %c0_24] : memref<8x128xf32, #tpu.memory_space<vmem>>, vector<8x128xf32>
    tpu.vector_store %arg8[%c0_23, %c0_24], %27 {strides = array<i32>} : memref<8x128xf32, #tpu.memory_space<vmem>>, vector<8x128xf32>,
    return
  }
  func.func @transform_0(%arg0: i32) -> (i32, i32) {
    %c0_i32 = arith.constant 0 : i32
    %c0_i32_0 = arith.constant 0 : i32
    return %arg0, %c0_i32 : i32, i32
  }
  func.func @transform_1(%arg0: i32) -> (i32, i32) {
    %c0_i32 = arith.constant 0 : i32
    %c0_i32_0 = arith.constant 0 : i32
    %c0_i32_1 = arith.constant 0 : i32
    return %c0_i32, %c0_i32_0 : i32, i32
  }
  func.func @transform_2(%arg0: i32) -> (i32, i32) {
    %c0_i32 = arith.constant 0 : i32
    %c0_i32_0 = arith.constant 0 : i32
    %c0_i32_1 = arith.constant 0 : i32
    return %c0_i32, %c0_i32_0 : i32, i32
  }
  func.func @transform_3(%arg0: i32) -> (i32, i32, i32) {
    %c0_i32 = arith.constant 0 : i32
    %c0_i32_0 = arith.constant 0 : i32
    %c0_i32_1 = arith.constant 0 : i32
    %c0_i32_2 = arith.constant 0 : i32
    return %c0_i32, %c0_i32_0, %c0_i32_1 : i32, i32, i32
  }
  func.func @transform_4(%arg0: i32) -> (i32, i32, i32) {
    %c0_i32 = arith.constant 0 : i32
    %c0_i32_0 = arith.constant 0 : i32
    %c0_i32_1 = arith.constant 0 : i32
    %c0_i32_2 = arith.constant 0 : i32
    return %c0_i32, %c0_i32_0, %c0_i32_1 : i32, i32, i32
  }
  func.func @transform_5(%arg0: i32) -> (i32, i32) {
    %c0_i32 = arith.constant 0 : i32
    %c0_i32_0 = arith.constant 0 : i32
    %c0_i32_1 = arith.constant 0 : i32
    return %c0_i32, %c0_i32_0 : i32, i32
  }
  func.func @transform_6(%arg0: i32) -> (i32, i32) {
    %c0_i32 = arith.constant 0 : i32
    %c0_i32_0 = arith.constant 0 : i32
    %c0_i32_1 = arith.constant 0 : i32
    return %c0_i32, %c0_i32_0 : i32, i32
  }
  func.func @transform_7(%arg0: i32) -> (i32, i32) {
    %c0_i32 = arith.constant 0 : i32
    %c0_i32_0 = arith.constant 0 : i32
    return %arg0, %c0_i32 : i32, i32
  }
}

module attributes {stable_mosaic.version = 11 : i64} {
  func.func @_fcn_kernel(%arg0: i32, %arg1: memref<8x2xf32, #tpu.memory_space<vmem>>, %arg2: memref<2x128xf32, #tpu.memory_space<vmem>>, %arg3: memref<1x128xf32, #tpu.memory_space<vmem>>, %arg4: memref<2x128x128xf32, #tpu.memory_space<vmem>>, %arg5: memref<2x1x128xf32, #tpu.memory_space<vmem>>, %arg6: memref<128x128xf32, #tpu.memory_space<vmem>>, %arg7: memref<1x128xf32, #tpu.memory_space<vmem>>, %arg8: memref<8x128xf32, #tpu.memory_space<vmem>>) attributes {dimension_semantics = [#tpu.dimension_semantics<parallel>], iteration_bounds = array<i64: 1>, scalar_prefetch = 0 : i64, scratch_operands = 0 : i64, tpu.core_type = #tpu.core_type<tc>, window_params = [{transform_indices = @transform_0, window_bounds = array<i64: 8, 2>}, {pipeline_mode = #tpu.pipeline_mode<synchronous>, transform_indices = @transform_1, window_bounds = array<i64: 2, 128>}, {pipeline_mode = #tpu.pipeline_mode<synchronous>, transform_indices = @transform_2, window_bounds = array<i64: 1, 128>}, {pipeline_mode = #tpu.pipeline_mode<synchronous>, transform_indices = @transform_3, window_bounds = array<i64: 2, 128, 128>}, {pipeline_mode = #tpu.pipeline_mode<synchronous>, transform_indices = @transform_4, window_bounds = array<i64: 2, 1, 128>}, {pipeline_mode = #tpu.pipeline_mode<synchronous>, transform_indices = @transform_5, window_bounds = array<i64: 128, 128>}, {pipeline_mode = #tpu.pipeline_mode<synchronous>, transform_indices = @transform_6, window_bounds = array<i64: 1, 128>}, {transform_indices = @transform_7, window_bounds = array<i64: 8, 128>}]} {
    %c0 = arith.constant 0 : index
    %c0_0 = arith.constant 0 : index
    %0 = vector.load %arg1[%c0, %c0_0] : memref<8x2xf32, #tpu.memory_space<vmem>>, vector<8x2xf32>
    %c0_1 = arith.constant 0 : index
    %c0_2 = arith.constant 0 : index
    %1 = vector.load %arg2[%c0_1, %c0_2] : memref<2x128xf32, #tpu.memory_space<vmem>>, vector<2x128xf32>
    %cst = arith.constant dense<0.000000e+00> : vector<8x128xf32>
    %2 = tpu.matmul %0, %1, %cst {dimension_numbers = #tpu.dot_dimension_numbers<[1], [0], [0], [1], [0, 0, 1, 1], [], []>} : vector<8x2xf32>, vector<2x128xf32>, vector<8x128xf32> -> vector<8x128xf32>
    %c0_3 = arith.constant 0 : index
    %c0_4 = arith.constant 0 : index
    %3 = vector.load %arg3[%c0_3, %c0_4] : memref<1x128xf32, #tpu.memory_space<vmem>>, vector<1x128xf32>
    %4 = vector.broadcast %3 : vector<1x128xf32> to vector<8x128xf32>
    %5 = arith.addf %2, %4 : vector<8x128xf32>
    %6 = math.tanh %5 : vector<8x128xf32>
    %c0_5 = arith.constant 0 : index
    %c0_6 = arith.constant 0 : index
    %c0_7 = arith.constant 0 : index
    %7 = vector.load %arg4[%c0_5, %c0_6, %c0_7] : memref<2x128x128xf32, #tpu.memory_space<vmem>>, vector<1x128x128xf32>
    %8 = vector.shape_cast %7 : vector<1x128x128xf32> to vector<128x128xf32>
    %cst_8 = arith.constant dense<0.000000e+00> : vector<8x128xf32>
    %9 = tpu.matmul %6, %8, %cst_8 {dimension_numbers = #tpu.dot_dimension_numbers<[1], [0], [0], [1], [0, 0, 1, 1], [], []>} : vector<8x128xf32>, vector<128x128xf32>, vector<8x128xf32> -> vector<8x128xf32>
    %c0_9 = arith.constant 0 : index
    %c0_10 = arith.constant 0 : index
    %c0_11 = arith.constant 0 : index
    %10 = vector.load %arg5[%c0_9, %c0_10, %c0_11] : memref<2x1x128xf32, #tpu.memory_space<vmem>>, vector<1x1x128xf32>
    %11 = vector.shape_cast %10 : vector<1x1x128xf32> to vector<1x128xf32>
    %12 = vector.broadcast %11 : vector<1x128xf32> to vector<8x128xf32>
    %13 = arith.addf %9, %12 : vector<8x128xf32>
    %14 = math.tanh %13 : vector<8x128xf32>
    %c1 = arith.constant 1 : index
    %c0_12 = arith.constant 0 : index
    %c0_13 = arith.constant 0 : index
    %15 = vector.load %arg4[%c1, %c0_12, %c0_13] : memref<2x128x128xf32, #tpu.memory_space<vmem>>, vector<1x128x128xf32>
    %16 = vector.shape_cast %15 : vector<1x128x128xf32> to vector<128x128xf32>
    %cst_14 = arith.constant dense<0.000000e+00> : vector<8x128xf32>
    %17 = tpu.matmul %14, %16, %cst_14 {dimension_numbers = #tpu.dot_dimension_numbers<[1], [0], [0], [1], [0, 0, 1, 1], [], []>} : vector<8x128xf32>, vector<128x128xf32>, vector<8x128xf32> -> vector<8x128xf32>
    %c1_15 = arith.constant 1 : index
    %c0_16 = arith.constant 0 : index
    %c0_17 = arith.constant 0 : index
    %18 = vector.load %arg5[%c1_15, %c0_16, %c0_17] : memref<2x1x128xf32, #tpu.memory_space<vmem>>, vector<1x1x128xf32>
    %19 = vector.shape_cast %18 : vector<1x1x128xf32> to vector<1x128xf32>
    %20 = vector.broadcast %19 : vector<1x128xf32> to vector<8x128xf32>
    %21 = arith.addf %17, %20 : vector<8x128xf32>
    %22 = math.tanh %21 : vector<8x128xf32>
    %c0_18 = arith.constant 0 : index
    %c0_19 = arith.constant 0 : index
    %23 = vector.load %arg6[%c0_18, %c0_19] : memref<128x128xf32, #tpu.memory_space<vmem>>, vector<128x128xf32>
    %cst_20 = arith.constant dense<0.000000e+00> : vector<8x128xf32>
    %24 = tpu.matmul %22, %23, %cst_20 {dimension_numbers = #tpu.dot_dimension_numbers<[1], [0], [0], [1], [0, 0, 1, 1], [], []>} : vector<8x128xf32>, vector<128x128xf32>, vector<8x128xf32> -> vector<8x128xf32>
    %c0_21 = arith.constant 0 : index
    %c0_22 = arith.constant 0 : index
    %25 = vector.load %arg7[%c0_21, %c0_22] : memref<1x128xf32, #tpu.memory_space<vmem>>, vector<1x128xf32>
    %26 = vector.broadcast %25 : vector<1x128xf32> to vector<8x128xf32>
    %27 = arith.addf %24, %26 : vector<8x128xf32>
    %c0_23 = arith.constant 0 : index
    %c0_24 = arith.constant 0 : index
    %28 = vector.load %arg8[%c0_23, %c0_24] : memref<8x128xf32, #tpu.memory_space<vmem>>, vector<8x128xf32>
    tpu.vector_store %arg8[%c0_23, %c0_24], %27 {strides = array<i32>} : memref<8x128xf32, #tpu.memory_space<vmem>>, vector<8x128xf32>,
    return
  }
  func.func @transform_0(%arg0: i32) -> (i32, i32) {
    %c0_i32 = arith.constant 0 : i32
    %c0_i32_0 = arith.constant 0 : i32
    return %arg0, %c0_i32 : i32, i32
  }
  func.func @transform_1(%arg0: i32) -> (i32, i32) {
    %c0_i32 = arith.constant 0 : i32
    %c0_i32_0 = arith.constant 0 : i32
    %c0_i32_1 = arith.constant 0 : i32
    return %c0_i32, %c0_i32_0 : i32, i32
  }
  func.func @transform_2(%arg0: i32) -> (i32, i32) {
    %c0_i32 = arith.constant 0 : i32
    %c0_i32_0 = arith.constant 0 : i32
    %c0_i32_1 = arith.constant 0 : i32
    return %c0_i32, %c0_i32_0 : i32, i32
  }
  func.func @transform_3(%arg0: i32) -> (i32, i32, i32) {
    %c0_i32 = arith.constant 0 : i32
    %c0_i32_0 = arith.constant 0 : i32
    %c0_i32_1 = arith.constant 0 : i32
    %c0_i32_2 = arith.constant 0 : i32
    return %c0_i32, %c0_i32_0, %c0_i32_1 : i32, i32, i32
  }
  func.func @transform_4(%arg0: i32) -> (i32, i32, i32) {
    %c0_i32 = arith.constant 0 : i32
    %c0_i32_0 = arith.constant 0 : i32
    %c0_i32_1 = arith.constant 0 : i32
    %c0_i32_2 = arith.constant 0 : i32
    return %c0_i32, %c0_i32_0, %c0_i32_1 : i32, i32, i32
  }
  func.func @transform_5(%arg0: i32) -> (i32, i32) {
    %c0_i32 = arith.constant 0 : i32
    %c0_i32_0 = arith.constant 0 : i32
    %c0_i32_1 = arith.constant 0 : i32
    return %c0_i32, %c0_i32_0 : i32, i32
  }
  func.func @transform_6(%arg0: i32) -> (i32, i32) {
    %c0_i32 = arith.constant 0 : i32
    %c0_i32_0 = arith.constant 0 : i32
    %c0_i32_1 = arith.constant 0 : i32
    return %c0_i32, %c0_i32_0 : i32, i32
  }
  func.func @transform_7(%arg0: i32) -> (i32, i32) {
    %c0_i32 = arith.constant 0 : i32
    %c0_i32_0 = arith.constant 0 : i32
    return %arg0, %c0_i32 : i32, i32
  }
}

</mosaic_0001>

<llo_original>
// kernel: tpu_custom_call.1
$region0: #{tpu_custom_call.1}
  #allocation0 [shape = 'u32[]', space=smem, size = 0x4, offset = 0x4, fixed_abs, tag = 'smem constant byte address 0x4 - core index']
  #allocation1 [shape = 'u32[72,128]{1,0:T(1,128)}', space=vmem, size = 0x9000, scoped, tag = 'internal scratch']
  %s0 = inlined_call_operand.vmem [shape: f32[8,2], index: 0, kind: input, shape index: {}]
  %s1 = inlined_call_operand.vmem [shape: f32[2,128], index: 1, kind: input, shape index: {}]
  %s2 = inlined_call_operand.vmem [shape: f32[1,128], index: 2, kind: input, shape index: {}]
  %s3 = inlined_call_operand.hbm [shape: f32[2,128,128], index: 3, kind: input, shape index: {}]
  %s4 = inlined_call_operand.vmem [shape: f32[2,1,128], index: 4, kind: input, shape index: {}]
  %s5 = inlined_call_operand.hbm [shape: f32[128,128], index: 5, kind: input, shape index: {}]
  %s6 = inlined_call_operand.vmem [shape: f32[1,128], index: 6, kind: input, shape index: {}]
  %s7 = inlined_call_operand.hbm [shape: f32[8,128], index: 7, kind: output, shape index: {}]
  %s8 = sld [smem:[#allocation0]]
  $region46: #{tpu_custom_call.1} parent=0
    _
  %s10 = ssub.s32 1, %s8
  %s11 = scalar_select 0, %s10, %s8
  $region1: #{tpu_custom_call.1} parent=0
    #allocation2 [shape = 'u8[131072]{0}', space=vmem, size = 0x20000, scoped, tag = 'input window, operand 3, single buffered']
    #allocation3 [shape = 's32[1]{0}', space=sflag, size = 0x4, scoped, tag = 'scoped memory for tpu_custom_call.1']
    #allocation4 [shape = 's32[1]{0}', space=sflag, size = 0x4, scoped, tag = 'scoped memory for tpu_custom_call.1']
    #allocation5 [shape = 'u8[65536]{0}', space=vmem, size = 0x10000, scoped, tag = 'input window, operand 5, single buffered']
    #allocation6 [shape = 's32[1]{0}', space=sflag, size = 0x4, scoped, tag = 'scoped memory for tpu_custom_call.1']
    #allocation7 [shape = 'u8[4096]{0}', space=vmem, size = 0x1000, scoped, tag = 'output window, operand 0, single buffered']
    %12 = vsyncpa [#allocation3], 0
    %13 = vsyncpa [#allocation6], 0
    %14 = vsyncpa [#allocation4], 0
    // Predicated region
    $region2: #{tpu_custom_call.1} parent=1 // pred_check
      _
    $region3: #{tpu_custom_call.1} parent=1 // pred_check_branch
      %16 = sbr.rel (0) target = $region5
    $region4: #{tpu_custom_call.1} parent=1 // pred_region
      _
    $region5: #{tpu_custom_call.1} parent=1 // pred_fallthru
      _
    // Predicated region
    $region6: #{tpu_custom_call.1} parent=1 // pred_check
      _
    $region7: #{tpu_custom_call.1} parent=1 // pred_check_branch
      %18 = sbr.rel (0) target = $region9
    $region8: #{tpu_custom_call.1} parent=1 // pred_region
      _
    $region9: #{tpu_custom_call.1} parent=1 // pred_fallthru
      _
    // Predicated region
    $region10: #{tpu_custom_call.1} parent=1 // pred_check
      _
    $region11: #{tpu_custom_call.1} parent=1 // pred_check_branch
      %20 = sbr.rel (0) target = $region13
    $region12: #{tpu_custom_call.1} parent=1 // pred_region
      _
    $region13: #{tpu_custom_call.1} parent=1 // pred_fallthru
      _
    // Predicated region
    $region14: #{tpu_custom_call.1} parent=1 // pred_check
      _
    $region15: #{tpu_custom_call.1} parent=1 // pred_check_branch
      %22 = sbr.rel (0) target = $region17
    $region16: #{tpu_custom_call.1} parent=1 // pred_region
      %24 = vsyncadd [#allocation3], 0
      %s25 = sshll.u32 %s3, 4
      %s26 = int_to_ptr.hbm [resolvable:$true] %s25
      %s27 = sshll.u32 [#allocation2], 4
      %s28 = int_to_ptr.vmem [resolvable:$true] %s27
      %33 = dma.hbm_to_vmem [thread:$0]  %s26, 4096, %s28, [#allocation3], 128, 128, 8
    $region17: #{tpu_custom_call.1} parent=1 // pred_fallthru
      _
    // Predicated region
    $region18: #{tpu_custom_call.1} parent=1 // pred_check
      _
    $region19: #{tpu_custom_call.1} parent=1 // pred_check_branch
      %35 = sbr.rel (0) target = $region21
    $region20: #{tpu_custom_call.1} parent=1 // pred_region
      _
    $region21: #{tpu_custom_call.1} parent=1 // pred_fallthru
      _
    // Predicated region
    $region22: #{tpu_custom_call.1} parent=1 // pred_check
      _
    $region23: #{tpu_custom_call.1} parent=1 // pred_check_branch
      %37 = sbr.rel (0) target = $region25
    $region24: #{tpu_custom_call.1} parent=1 // pred_region
      %39 = vsyncadd [#allocation6], 0
      %s40 = sshll.u32 %s5, 4
      %s41 = int_to_ptr.hbm [resolvable:$true] %s40
      %s42 = sshll.u32 [#allocation5], 4
      %s43 = int_to_ptr.vmem [resolvable:$true] %s42
      %48 = dma.hbm_to_vmem [thread:$0]  %s41, 2048, %s43, [#allocation6], 128, 128, 8
    $region25: #{tpu_custom_call.1} parent=1 // pred_fallthru
      _
    // Predicated region
    $region26: #{tpu_custom_call.1} parent=1 // pred_check
      _
    $region27: #{tpu_custom_call.1} parent=1 // pred_check_branch
      %50 = sbr.rel (0) target = $region29
    $region28: #{tpu_custom_call.1} parent=1 // pred_region
      _
    $region29: #{tpu_custom_call.1} parent=1 // pred_fallthru
      _
    // Predicated region
    $region30: #{tpu_custom_call.1} parent=1 // pred_check
      _
    $region31: #{tpu_custom_call.1} parent=1 // pred_check_branch
      %52 = sbr.rel (0) target = $region33
    $region32: #{tpu_custom_call.1} parent=1 // pred_region
      %54 = dma.done [#allocation3], 4096
    $region33: #{tpu_custom_call.1} parent=1 // pred_fallthru
      _
    // Predicated region
    $region34: #{tpu_custom_call.1} parent=1 // pred_check
      _
    $region35: #{tpu_custom_call.1} parent=1 // pred_check_branch
      %56 = sbr.rel (0) target = $region37
    $region36: #{tpu_custom_call.1} parent=1 // pred_region
      %58 = dma.done [#allocation6], 2048
    $region37: #{tpu_custom_call.1} parent=1 // pred_fallthru
      _
    %v59 = vld [vmem:[%s0] sm:$0xff]
    %v60 = vld [vmem:[%s1] sm:$0x3]
    %v61 = vld [vmem:[%s2] sm:$0x1]
    %v63 = vperm.slane %v61, 0
    %vm65 = vcmask 15360
    %v67 = vsel %vm65, %v59, 0
    %vm69 = vcmask 1041408
    %v71 = vsel %vm69, %v60, 0
    %73 = vmatpush.msra.mxu0 0.0
    %74 = vmatpush.msra.mxu0 0.0
    %75 = vmatpush.msra.mxu0 0.0
    %76 = vmatpush.msra.mxu0 0.0
    %77 = vmatpush.msra.mxu0 0.0
    %78 = vmatpush.msra.mxu0 0.0
    %79 = vmatpush.msra.mxu0 0.0
    %80 = vmatpush.msra.mxu0 0.0
    %81 = vmatpush.msra.mxu0 0.0
    %82 = vmatpush.msra.mxu0 0.0
    %83 = vmatpush.msra.mxu0 0.0
    %84 = vmatpush.msra.mxu0 0.0
    %85 = vmatpush.msra.mxu0 0.0
    %86 = vmatpush.msra.mxu0 0.0
    %87 = vmatpush.msra.mxu0 0.0
    %88 = vmatpush.msra.mxu0 %v71
    %89 = vmatmul.f32.gmra.mxu0 %v67
    %v90 = vpop.f32.mrf.mxu0
    %v91 = vadd.f32 %v63, %v90
    %92 = vdwg.mxu0
    %v93 = vtanh.pop %v91
    %v94 = vld [vmem:[#allocation2] sm:$0xff]
    %v95 = vld [vmem:[#allocation2 + $0x8] sm:$0xff]
    %v96 = vld [vmem:[#allocation2 + $0x10] sm:$0xff]
    %v97 = vld [vmem:[#allocation2 + $0x18] sm:$0xff]
    %v98 = vld [vmem:[#allocation2 + $0x20] sm:$0xff]
    %v99 = vld [vmem:[#allocation2 + $0x28] sm:$0xff]
    %v100 = vld [vmem:[#allocation2 + $0x30] sm:$0xff]
    %v101 = vld [vmem:[#allocation2 + $0x38] sm:$0xff]
    %v102 = vld [vmem:[#allocation2 + $0x40] sm:$0xff]
    %v103 = vld [vmem:[#allocation2 + $0x48] sm:$0xff]
    %v104 = vld [vmem:[#allocation2 + $0x50] sm:$0xff]
    %v105 = vld [vmem:[#allocation2 + $0x58] sm:$0xff]
    %v106 = vld [vmem:[#allocation2 + $0x60] sm:$0xff]
    %v107 = vld [vmem:[#allocation2 + $0x68] sm:$0xff]
    %v108 = vld [vmem:[#allocation2 + $0x70] sm:$0xff]
    %v109 = vld [vmem:[#allocation2 + $0x78] sm:$0xff]
    %v110 = vld [vmem:[%s4] sm:$0x1]
    %v112 = vperm.slane %v110, 0
    %114 = vmatpush.msra.mxu0 %v109
    %115 = vmatpush.msra.mxu0 %v108
    %116 = vmatpush.msra.mxu0 %v107
    %117 = vmatpush.msra.mxu0 %v106
    %118 = vmatpush.msra.mxu0 %v105
    %119 = vmatpush.msra.mxu0 %v104
    %120 = vmatpush.msra.mxu0 %v103
    %121 = vmatpush.msra.mxu0 %v102
    %122 = vmatpush.msra.mxu0 %v101
    %123 = vmatpush.msra.mxu0 %v100
    %124 = vmatpush.msra.mxu0 %v99
    %125 = vmatpush.msra.mxu0 %v98
    %126 = vmatpush.msra.mxu0 %v97
    %127 = vmatpush.msra.mxu0 %v96
    %128 = vmatpush.msra.mxu0 %v95
    %129 = vmatpush.msra.mxu0 %v94
    %130 = vmatmul.f32.gmra.mxu0 %v93
    %v131 = vpop.f32.mrf.mxu0
    %v132 = vadd.f32 %v112, %v131
    %133 = vdwg.mxu0
    %v134 = vtanh.pop %v132
    %s135 = scalar_lea.vmem [#allocation2], 128
    %v136 = vld [vmem:[%s135] sm:$0xff]
    %v137 = vld [vmem:[%s135 + $0x8] sm:$0xff]
    %v138 = vld [vmem:[%s135 + $0x10] sm:$0xff]
    %v139 = vld [vmem:[%s135 + $0x18] sm:$0xff]
    %v140 = vld [vmem:[%s135 + $0x20] sm:$0xff]
    %v141 = vld [vmem:[%s135 + $0x28] sm:$0xff]
    %v142 = vld [vmem:[%s135 + $0x30] sm:$0xff]
    %v143 = vld [vmem:[%s135 + $0x38] sm:$0xff]
    %v144 = vld [vmem:[%s135 + $0x40] sm:$0xff]
    %v145 = vld [vmem:[%s135 + $0x48] sm:$0xff]
    %v146 = vld [vmem:[%s135 + $0x50] sm:$0xff]
    %v147 = vld [vmem:[%s135 + $0x58] sm:$0xff]
    %v148 = vld [vmem:[%s135 + $0x60] sm:$0xff]
    %v149 = vld [vmem:[%s135 + $0x68] sm:$0xff]
    %v150 = vld [vmem:[%s135 + $0x70] sm:$0xff]
    %v151 = vld [vmem:[%s135 + $0x78] sm:$0xff]
    %s152 = scalar_lea.vmem %s4, 1
    %v153 = vld [vmem:[%s152] sm:$0x1]
    %v155 = vperm.slane %v153, 0
    %157 = vmatpush.msra.mxu0 %v151
    %158 = vmatpush.msra.mxu0 %v150
    %159 = vmatpush.msra.mxu0 %v149
    %160 = vmatpush.msra.mxu0 %v148
    %161 = vmatpush.msra.mxu0 %v147
    %162 = vmatpush.msra.mxu0 %v146
    %163 = vmatpush.msra.mxu0 %v145
    %164 = vmatpush.msra.mxu0 %v144
    %165 = vmatpush.msra.mxu0 %v143
    %166 = vmatpush.msra.mxu0 %v142
    %167 = vmatpush.msra.mxu0 %v141
    %168 = vmatpush.msra.mxu0 %v140
    %169 = vmatpush.msra.mxu0 %v139
    %170 = vmatpush.msra.mxu0 %v138
    %171 = vmatpush.msra.mxu0 %v137
    %172 = vmatpush.msra.mxu0 %v136
    %173 = vmatmul.f32.gmra.mxu0 %v134
    %v174 = vpop.f32.mrf.mxu0
    %v175 = vadd.f32 %v155, %v174
    %176 = vdwg.mxu0
    %v177 = vtanh.pop %v175
    %v178 = vld [vmem:[#allocation5] sm:$0xff]
    %v179 = vld [vmem:[#allocation5 + $0x8] sm:$0xff]
    %v180 = vld [vmem:[#allocation5 + $0x10] sm:$0xff]
    %v181 = vld [vmem:[#allocation5 + $0x18] sm:$0xff]
    %v182 = vld [vmem:[#allocation5 + $0x20] sm:$0xff]
    %v183 = vld [vmem:[#allocation5 + $0x28] sm:$0xff]
    %v184 = vld [vmem:[#allocation5 + $0x30] sm:$0xff]
    %v185 = vld [vmem:[#allocation5 + $0x38] sm:$0xff]
    %v186 = vld [vmem:[#allocation5 + $0x40] sm:$0xff]
    %v187 = vld [vmem:[#allocation5 + $0x48] sm:$0xff]
    %v188 = vld [vmem:[#allocation5 + $0x50] sm:$0xff]
    %v189 = vld [vmem:[#allocation5 + $0x58] sm:$0xff]
    %v190 = vld [vmem:[#allocation5 + $0x60] sm:$0xff]
    %v191 = vld [vmem:[#allocation5 + $0x68] sm:$0xff]
    %v192 = vld [vmem:[#allocation5 + $0x70] sm:$0xff]
    %v193 = vld [vmem:[#allocation5 + $0x78] sm:$0xff]
    %v194 = vld [vmem:[%s6] sm:$0x1]
    %v196 = vperm.slane %v194, 0
    %198 = vmatpush.msra.mxu0 %v193
    %199 = vmatpush.msra.mxu0 %v192
    %200 = vmatpush.msra.mxu0 %v191
    %201 = vmatpush.msra.mxu0 %v190
    %202 = vmatpush.msra.mxu0 %v189
    %203 = vmatpush.msra.mxu0 %v188
    %204 = vmatpush.msra.mxu0 %v187
    %205 = vmatpush.msra.mxu0 %v186
    %206 = vmatpush.msra.mxu0 %v185
    %207 = vmatpush.msra.mxu0 %v184
    %208 = vmatpush.msra.mxu0 %v183
    %209 = vmatpush.msra.mxu0 %v182
    %210 = vmatpush.msra.mxu0 %v181
    %211 = vmatpush.msra.mxu0 %v180
    %212 = vmatpush.msra.mxu0 %v179
    %213 = vmatpush.msra.mxu0 %v178
    %214 = vmatmul.f32.gmra.mxu0 %v177
    %v215 = vpop.f32.mrf.mxu0
    %v216 = vadd.f32 %v196, %v215
    %217 = vdwg.mxu0
    %218 = vst [vmem:[#allocation7] sm:$0xff] %v216
    // Predicated region
    $region38: #{tpu_custom_call.1} parent=1 // pred_check
      _
    $region39: #{tpu_custom_call.1} parent=1 // pred_check_branch
      %220 = sbr.rel (0) target = $region41
    $region40: #{tpu_custom_call.1} parent=1 // pred_region
      %222 = vsyncadd [#allocation4], 0
      %s224 = sshll.u32 [#allocation7], 4
      %s225 = int_to_ptr.vmem [resolvable:$true] %s224
      %s226 = sshll.u32 %s7, 4
      %s227 = int_to_ptr.hbm [resolvable:$true] %s226
      %229 = dma.vmem_to_hbm [thread:$0]  %s225, 128, %s227, [#allocation4]
    $region41: #{tpu_custom_call.1} parent=1 // pred_fallthru
      _
    // Predicated region
    $region42: #{tpu_custom_call.1} parent=1 // pred_check
      _
    $region43: #{tpu_custom_call.1} parent=1 // pred_check_branch
      %231 = sbr.rel (0) target = $region45
    $region44: #{tpu_custom_call.1} parent=1 // pred_region
      %233 = dma.done [#allocation4], 128
    $region45: #{tpu_custom_call.1} parent=1 // pred_fallthru
      _
    %234 = vsyncpa [#allocation3], 1
    %235 = vsyncpa [#allocation6], 1
    %236 = vsyncpa [#allocation4], 1

// kernel: tpu_custom_call.1
$region0: #{tpu_custom_call.1}
  #allocation0 [shape = 'u32[]', space=smem, size = 0x4, offset = 0x4, fixed_abs, tag = 'smem constant byte address 0x4 - core index']
  #allocation1 [shape = 'u32[72,128]{1,0:T(1,128)}', space=vmem, size = 0x9000, scoped, tag = 'internal scratch']
  %s0 = inlined_call_operand.vmem [shape: f32[8,2], index: 0, kind: input, shape index: {}]
  %s1 = inlined_call_operand.vmem [shape: f32[2,128], index: 1, kind: input, shape index: {}]
  %s2 = inlined_call_operand.vmem [shape: f32[1,128], index: 2, kind: input, shape index: {}]
  %s3 = inlined_call_operand.hbm [shape: f32[2,128,128], index: 3, kind: input, shape index: {}]
  %s4 = inlined_call_operand.vmem [shape: f32[2,1,128], index: 4, kind: input, shape index: {}]
  %s5 = inlined_call_operand.hbm [shape: f32[128,128], index: 5, kind: input, shape index: {}]
  %s6 = inlined_call_operand.vmem [shape: f32[1,128], index: 6, kind: input, shape index: {}]
  %s7 = inlined_call_operand.hbm [shape: f32[8,128], index: 7, kind: output, shape index: {}]
  %s8 = sld [smem:[#allocation0]]
  $region46: #{tpu_custom_call.1} parent=0
    _
  %s10 = ssub.s32 1, %s8
  %s11 = scalar_select 0, %s10, %s8
  $region1: #{tpu_custom_call.1} parent=0
    #allocation2 [shape = 'u8[131072]{0}', space=vmem, size = 0x20000, scoped, tag = 'input window, operand 3, single buffered']
    #allocation3 [shape = 's32[1]{0}', space=sflag, size = 0x4, scoped, tag = 'scoped memory for tpu_custom_call.1']
    #allocation4 [shape = 's32[1]{0}', space=sflag, size = 0x4, scoped, tag = 'scoped memory for tpu_custom_call.1']
    #allocation5 [shape = 'u8[65536]{0}', space=vmem, size = 0x10000, scoped, tag = 'input window, operand 5, single buffered']
    #allocation6 [shape = 's32[1]{0}', space=sflag, size = 0x4, scoped, tag = 'scoped memory for tpu_custom_call.1']
    #allocation7 [shape = 'u8[4096]{0}', space=vmem, size = 0x1000, scoped, tag = 'output window, operand 0, single buffered']
    %12 = vsyncpa [#allocation3], 0
    %13 = vsyncpa [#allocation6], 0
    %14 = vsyncpa [#allocation4], 0
    // Predicated region
    $region2: #{tpu_custom_call.1} parent=1 // pred_check
      _
    $region3: #{tpu_custom_call.1} parent=1 // pred_check_branch
      %16 = sbr.rel (0) target = $region5
    $region4: #{tpu_custom_call.1} parent=1 // pred_region
      _
    $region5: #{tpu_custom_call.1} parent=1 // pred_fallthru
      _
    // Predicated region
    $region6: #{tpu_custom_call.1} parent=1 // pred_check
      _
    $region7: #{tpu_custom_call.1} parent=1 // pred_check_branch
      %18 = sbr.rel (0) target = $region9
    $region8: #{tpu_custom_call.1} parent=1 // pred_region
      _
    $region9: #{tpu_custom_call.1} parent=1 // pred_fallthru
      _
    // Predicated region
    $region10: #{tpu_custom_call.1} parent=1 // pred_check
      _
    $region11: #{tpu_custom_call.1} parent=1 // pred_check_branch
      %20 = sbr.rel (0) target = $region13
    $region12: #{tpu_custom_call.1} parent=1 // pred_region
      _
    $region13: #{tpu_custom_call.1} parent=1 // pred_fallthru
      _
    // Predicated region
    $region14: #{tpu_custom_call.1} parent=1 // pred_check
      _
    $region15: #{tpu_custom_call.1} parent=1 // pred_check_branch
      %22 = sbr.rel (0) target = $region17
    $region16: #{tpu_custom_call.1} parent=1 // pred_region
      %24 = vsyncadd [#allocation3], 0
      %s25 = sshll.u32 %s3, 4
      %s26 = int_to_ptr.hbm [resolvable:$true] %s25
      %s27 = sshll.u32 [#allocation2], 4
      %s28 = int_to_ptr.vmem [resolvable:$true] %s27
      %33 = dma.hbm_to_vmem [thread:$0]  %s26, 4096, %s28, [#allocation3], 128, 128, 8
    $region17: #{tpu_custom_call.1} parent=1 // pred_fallthru
      _
    // Predicated region
    $region18: #{tpu_custom_call.1} parent=1 // pred_check
      _
    $region19: #{tpu_custom_call.1} parent=1 // pred_check_branch
      %35 = sbr.rel (0) target = $region21
    $region20: #{tpu_custom_call.1} parent=1 // pred_region
      _
    $region21: #{tpu_custom_call.1} parent=1 // pred_fallthru
      _
    // Predicated region
    $region22: #{tpu_custom_call.1} parent=1 // pred_check
      _
    $region23: #{tpu_custom_call.1} parent=1 // pred_check_branch
      %37 = sbr.rel (0) target = $region25
    $region24: #{tpu_custom_call.1} parent=1 // pred_region
      %39 = vsyncadd [#allocation6], 0
      %s40 = sshll.u32 %s5, 4
      %s41 = int_to_ptr.hbm [resolvable:$true] %s40
      %s42 = sshll.u32 [#allocation5], 4
      %s43 = int_to_ptr.vmem [resolvable:$true] %s42
      %48 = dma.hbm_to_vmem [thread:$0]  %s41, 2048, %s43, [#allocation6], 128, 128, 8
    $region25: #{tpu_custom_call.1} parent=1 // pred_fallthru
      _
    // Predicated region
    $region26: #{tpu_custom_call.1} parent=1 // pred_check
      _
    $region27: #{tpu_custom_call.1} parent=1 // pred_check_branch
      %50 = sbr.rel (0) target = $region29
    $region28: #{tpu_custom_call.1} parent=1 // pred_region
      _
    $region29: #{tpu_custom_call.1} parent=1 // pred_fallthru
      _
    // Predicated region
    $region30: #{tpu_custom_call.1} parent=1 // pred_check
      _
    $region31: #{tpu_custom_call.1} parent=1 // pred_check_branch
      %52 = sbr.rel (0) target = $region33
    $region32: #{tpu_custom_call.1} parent=1 // pred_region
      %54 = dma.done [#allocation3], 4096
    $region33: #{tpu_custom_call.1} parent=1 // pred_fallthru
      _
    // Predicated region
    $region34: #{tpu_custom_call.1} parent=1 // pred_check
      _
    $region35: #{tpu_custom_call.1} parent=1 // pred_check_branch
      %56 = sbr.rel (0) target = $region37
    $region36: #{tpu_custom_call.1} parent=1 // pred_region
      %58 = dma.done [#allocation6], 2048
    $region37: #{tpu_custom_call.1} parent=1 // pred_fallthru
      _
    %v59 = vld [vmem:[%s0] sm:$0xff]
    %v60 = vld [vmem:[%s1] sm:$0x3]
    %v61 = vld [vmem:[%s2] sm:$0x1]
    %v63 = vperm.slane %v61, 0
    %vm65 = vcmask 15360
    %v67 = vsel %vm65, %v59, 0
    %vm69 = vcmask 1041408
    %v71 = vsel %vm69, %v60, 0
    %73 = vmatpush.msra.mxu0 0.0
    %74 = vmatpush.msra.mxu0 0.0
    %75 = vmatpush.msra.mxu0 0.0
    %76 = vmatpush.msra.mxu0 0.0
    %77 = vmatpush.msra.mxu0 0.0
    %78 = vmatpush.msra.mxu0 0.0
    %79 = vmatpush.msra.mxu0 0.0
    %80 = vmatpush.msra.mxu0 0.0
    %81 = vmatpush.msra.mxu0 0.0
    %82 = vmatpush.msra.mxu0 0.0
    %83 = vmatpush.msra.mxu0 0.0
    %84 = vmatpush.msra.mxu0 0.0
    %85 = vmatpush.msra.mxu0 0.0
    %86 = vmatpush.msra.mxu0 0.0
    %87 = vmatpush.msra.mxu0 0.0
    %88 = vmatpush.msra.mxu0 %v71
    %89 = vmatmul.f32.gmra.mxu0 %v67
    %v90 = vpop.f32.mrf.mxu0
    %v91 = vadd.f32 %v63, %v90
    %92 = vdwg.mxu0
    %v93 = vtanh.pop %v91
    %v94 = vld [vmem:[#allocation2] sm:$0xff]
    %v95 = vld [vmem:[#allocation2 + $0x8] sm:$0xff]
    %v96 = vld [vmem:[#allocation2 + $0x10] sm:$0xff]
    %v97 = vld [vmem:[#allocation2 + $0x18] sm:$0xff]
    %v98 = vld [vmem:[#allocation2 + $0x20] sm:$0xff]
    %v99 = vld [vmem:[#allocation2 + $0x28] sm:$0xff]
    %v100 = vld [vmem:[#allocation2 + $0x30] sm:$0xff]
    %v101 = vld [vmem:[#allocation2 + $0x38] sm:$0xff]
    %v102 = vld [vmem:[#allocation2 + $0x40] sm:$0xff]
    %v103 = vld [vmem:[#allocation2 + $0x48] sm:$0xff]
    %v104 = vld [vmem:[#allocation2 + $0x50] sm:$0xff]
    %v105 = vld [vmem:[#allocation2 + $0x58] sm:$0xff]
    %v106 = vld [vmem:[#allocation2 + $0x60] sm:$0xff]
    %v107 = vld [vmem:[#allocation2 + $0x68] sm:$0xff]
    %v108 = vld [vmem:[#allocation2 + $0x70] sm:$0xff]
    %v109 = vld [vmem:[#allocation2 + $0x78] sm:$0xff]
    %v110 = vld [vmem:[%s4] sm:$0x1]
    %v112 = vperm.slane %v110, 0
    %114 = vmatpush.msra.mxu0 %v109
    %115 = vmatpush.msra.mxu0 %v108
    %116 = vmatpush.msra.mxu0 %v107
    %117 = vmatpush.msra.mxu0 %v106
    %118 = vmatpush.msra.mxu0 %v105
    %119 = vmatpush.msra.mxu0 %v104
    %120 = vmatpush.msra.mxu0 %v103
    %121 = vmatpush.msra.mxu0 %v102
    %122 = vmatpush.msra.mxu0 %v101
    %123 = vmatpush.msra.mxu0 %v100
    %124 = vmatpush.msra.mxu0 %v99
    %125 = vmatpush.msra.mxu0 %v98
    %126 = vmatpush.msra.mxu0 %v97
    %127 = vmatpush.msra.mxu0 %v96
    %128 = vmatpush.msra.mxu0 %v95
    %129 = vmatpush.msra.mxu0 %v94
    %130 = vmatmul.f32.gmra.mxu0 %v93
    %v131 = vpop.f32.mrf.mxu0
    %v132 = vadd.f32 %v112, %v131
    %133 = vdwg.mxu0
    %v134 = vtanh.pop %v132
    %s135 = scalar_lea.vmem [#allocation2], 128
    %v136 = vld [vmem:[%s135] sm:$0xff]
    %v137 = vld [vmem:[%s135 + $0x8] sm:$0xff]
    %v138 = vld [vmem:[%s135 + $0x10] sm:$0xff]
    %v139 = vld [vmem:[%s135 + $0x18] sm:$0xff]
    %v140 = vld [vmem:[%s135 + $0x20] sm:$0xff]
    %v141 = vld [vmem:[%s135 + $0x28] sm:$0xff]
    %v142 = vld [vmem:[%s135 + $0x30] sm:$0xff]
    %v143 = vld [vmem:[%s135 + $0x38] sm:$0xff]
    %v144 = vld [vmem:[%s135 + $0x40] sm:$0xff]
    %v145 = vld [vmem:[%s135 + $0x48] sm:$0xff]
    %v146 = vld [vmem:[%s135 + $0x50] sm:$0xff]
    %v147 = vld [vmem:[%s135 + $0x58] sm:$0xff]
    %v148 = vld [vmem:[%s135 + $0x60] sm:$0xff]
    %v149 = vld [vmem:[%s135 + $0x68] sm:$0xff]
    %v150 = vld [vmem:[%s135 + $0x70] sm:$0xff]
    %v151 = vld [vmem:[%s135 + $0x78] sm:$0xff]
    %s152 = scalar_lea.vmem %s4, 1
    %v153 = vld [vmem:[%s152] sm:$0x1]
    %v155 = vperm.slane %v153, 0
    %157 = vmatpush.msra.mxu0 %v151
    %158 = vmatpush.msra.mxu0 %v150
    %159 = vmatpush.msra.mxu0 %v149
    %160 = vmatpush.msra.mxu0 %v148
    %161 = vmatpush.msra.mxu0 %v147
    %162 = vmatpush.msra.mxu0 %v146
    %163 = vmatpush.msra.mxu0 %v145
    %164 = vmatpush.msra.mxu0 %v144
    %165 = vmatpush.msra.mxu0 %v143
    %166 = vmatpush.msra.mxu0 %v142
    %167 = vmatpush.msra.mxu0 %v141
    %168 = vmatpush.msra.mxu0 %v140
    %169 = vmatpush.msra.mxu0 %v139
    %170 = vmatpush.msra.mxu0 %v138
    %171 = vmatpush.msra.mxu0 %v137
    %172 = vmatpush.msra.mxu0 %v136
    %173 = vmatmul.f32.gmra.mxu0 %v134
    %v174 = vpop.f32.mrf.mxu0
    %v175 = vadd.f32 %v155, %v174
    %176 = vdwg.mxu0
    %v177 = vtanh.pop %v175
    %v178 = vld [vmem:[#allocation5] sm:$0xff]
    %v179 = vld [vmem:[#allocation5 + $0x8] sm:$0xff]
    %v180 = vld [vmem:[#allocation5 + $0x10] sm:$0xff]
    %v181 = vld [vmem:[#allocation5 + $0x18] sm:$0xff]
    %v182 = vld [vmem:[#allocation5 + $0x20] sm:$0xff]
    %v183 = vld [vmem:[#allocation5 + $0x28] sm:$0xff]
    %v184 = vld [vmem:[#allocation5 + $0x30] sm:$0xff]
    %v185 = vld [vmem:[#allocation5 + $0x38] sm:$0xff]
    %v186 = vld [vmem:[#allocation5 + $0x40] sm:$0xff]
    %v187 = vld [vmem:[#allocation5 + $0x48] sm:$0xff]
    %v188 = vld [vmem:[#allocation5 + $0x50] sm:$0xff]
    %v189 = vld [vmem:[#allocation5 + $0x58] sm:$0xff]
    %v190 = vld [vmem:[#allocation5 + $0x60] sm:$0xff]
    %v191 = vld [vmem:[#allocation5 + $0x68] sm:$0xff]
    %v192 = vld [vmem:[#allocation5 + $0x70] sm:$0xff]
    %v193 = vld [vmem:[#allocation5 + $0x78] sm:$0xff]
    %v194 = vld [vmem:[%s6] sm:$0x1]
    %v196 = vperm.slane %v194, 0
    %198 = vmatpush.msra.mxu0 %v193
    %199 = vmatpush.msra.mxu0 %v192
    %200 = vmatpush.msra.mxu0 %v191
    %201 = vmatpush.msra.mxu0 %v190
    %202 = vmatpush.msra.mxu0 %v189
    %203 = vmatpush.msra.mxu0 %v188
    %204 = vmatpush.msra.mxu0 %v187
    %205 = vmatpush.msra.mxu0 %v186
    %206 = vmatpush.msra.mxu0 %v185
    %207 = vmatpush.msra.mxu0 %v184
    %208 = vmatpush.msra.mxu0 %v183
    %209 = vmatpush.msra.mxu0 %v182
    %210 = vmatpush.msra.mxu0 %v181
    %211 = vmatpush.msra.mxu0 %v180
    %212 = vmatpush.msra.mxu0 %v179
    %213 = vmatpush.msra.mxu0 %v178
    %214 = vmatmul.f32.gmra.mxu0 %v177
    %v215 = vpop.f32.mrf.mxu0
    %v216 = vadd.f32 %v196, %v215
    %217 = vdwg.mxu0
    %218 = vst [vmem:[#allocation7] sm:$0xff] %v216
    // Predicated region
    $region38: #{tpu_custom_call.1} parent=1 // pred_check
      _
    $region39: #{tpu_custom_call.1} parent=1 // pred_check_branch
      %220 = sbr.rel (0) target = $region41
    $region40: #{tpu_custom_call.1} parent=1 // pred_region
      %222 = vsyncadd [#allocation4], 0
      %s224 = sshll.u32 [#allocation7], 4
      %s225 = int_to_ptr.vmem [resolvable:$true] %s224
      %s226 = sshll.u32 %s7, 4
      %s227 = int_to_ptr.hbm [resolvable:$true] %s226
      %229 = dma.vmem_to_hbm [thread:$0]  %s225, 128, %s227, [#allocation4]
    $region41: #{tpu_custom_call.1} parent=1 // pred_fallthru
      _
    // Predicated region
    $region42: #{tpu_custom_call.1} parent=1 // pred_check
      _
    $region43: #{tpu_custom_call.1} parent=1 // pred_check_branch
      %231 = sbr.rel (0) target = $region45
    $region44: #{tpu_custom_call.1} parent=1 // pred_region
      %233 = dma.done [#allocation4], 128
    $region45: #{tpu_custom_call.1} parent=1 // pred_fallthru
      _
    %234 = vsyncpa [#allocation3], 1
    %235 = vsyncpa [#allocation6], 1
    %236 = vsyncpa [#allocation4], 1

</llo_original>
